<compile_context>
chip_gen: v7x
topology: tpu7x:2x2x1
jax: 0.10.0
libtpu: 0.0.40
codegen_flags: <defaults>
</compile_context>

<pallas_src>
import jax
import jax.numpy as jnp
from jax.experimental import pallas as pl
from jax.experimental.pallas import tpu as pltpu


def _vmem_capacity_bytes():
    try:
        return int(pltpu.get_tpu_info().vmem_capacity_bytes)
    except Exception:
        return 64 << 20  # conservative (v7x per-TensorCore)


def _pick_row_tile(S, H, O_pad, out_itemsize):
    """Largest row tile whose double-buffered footprint leaves ample VMEM
    headroom; rounded to a multiple of 16 that divides S (or the full S)."""
    budget = _vmem_capacity_bytes() // 4
    per_row = 2 * H * 4 + 2 * O_pad * out_itemsize + H * 4 + O_pad * 4
    ts = budget // max(per_row, 1)
    if ts >= S:
        return S
    ts = max(16, (ts // 16) * 16)
    while ts > 16 and S % ts != 0:
        ts -= 16
    return ts if S % ts == 0 else S


def _make_kernel(TS, use_bf16_mxu):
    def kernel(cue_ref, s_ref, hs_ref, w_ref, b_ref, out_ref):
        # cue_ref: SMEM int32 (B,)      -- cue length per batch (scalar prefetch)
        # s_ref:   VMEM (1, H)   f32    -- subject vector for this batch
        # hs_ref:  VMEM (TS, H)  f32    -- row tile of hidden_states
        # w_ref:   VMEM (H, O_pad) f32  -- resident transposed weight (lane-padded)
        # b_ref:   VMEM (1, O_pad) f32  -- resident bias (lane-padded)
        # out_ref: VMEM (TS, O_pad) bf16
        b = pl.program_id(0)
        t = pl.program_id(1)
        cue_len = cue_ref[b]

        hs = hs_ref[...]                                           # (TS, H)
        s_vec = s_ref[...]                                         # (1, H)

        row_ids = t * TS + jax.lax.broadcasted_iota(jnp.int32, (TS, 1), 0)
        # delta computed once: no extra full-tile select on the accumulator.
        delta = jnp.where(row_ids < cue_len, s_vec, 0.0)           # (TS, H)
        new_hs = hs + delta

        if use_bf16_mxu:  # v5e option: feed the MXU bf16, accumulate f32
            logits = jnp.dot(new_hs.astype(jnp.bfloat16),
                             w_ref[...].astype(jnp.bfloat16),
                             preferred_element_type=jnp.float32)
        else:
            logits = jnp.dot(new_hs, w_ref[...],
                             preferred_element_type=jnp.float32)
        logits = logits + b_ref[...]

        p = jax.nn.sigmoid(logits)
        p2 = p * p
        out_ref[...] = (p2 * p2).astype(out_ref.dtype)             # sigmoid(x)**4

    return kernel


class Model4po:
    """Pallas TPU implementation of the PyTorch Model4po forward (eval mode)."""

    def __init__(self, weight, bias, use_bf16_mxu=False):
        # One-time static-parameter prep (hoisted out of the per-call path):
        # transpose to (H, O) and pad the lane dim to exactly 128.
        O, H = weight.shape
        self.out_features = O
        self.o_pad = max(128, pl.cdiv(O, 128) * 128)
        self.w_pad = jnp.zeros((H, self.o_pad), jnp.float32).at[:, :O].set(
            weight.T.astype(jnp.float32))
        self.b_pad = jnp.zeros((1, self.o_pad), jnp.float32).at[:, :O].set(
            bias.astype(jnp.float32))
        self.use_bf16_mxu = use_bf16_mxu

    def __call__(self, hidden_states, batch_subject_ids, input_mask):
        B, S, H = hidden_states.shape
        O = self.out_features
        O_pad = self.o_pad
        out_dtype = jnp.bfloat16
        out_itemsize = 2

        hs = hidden_states.astype(jnp.float32)

        # cue_len assumes a contiguous prefix mask (matches the module's usage).
        cue_len = jnp.sum(input_mask.astype(jnp.int32), axis=1)            # (B,)

        # s = hs[b, s_start] + hs[b, s_end] -- cheap XLA gather, done once.
        bidx = jnp.arange(B)
        ids = batch_subject_ids.astype(jnp.int32)
        s_mat = (hs[bidx, ids[:, 0]] + hs[bidx, ids[:, 1]]).reshape(B, 1, H)

        TS = _pick_row_tile(S, H, O_pad, out_itemsize)
        n_row_tiles = S // TS

        # Explicit scoped-VMEM budget sized to the actual per-tile footprint.
        tile_bytes = (2 * TS * H * 4                  # hs blocks (double-buffered)
                      + 2 * TS * O_pad * out_itemsize # out blocks (double-buffered)
                      + 2 * H * 4                     # s-row blocks
                      + H * O_pad * 4 + O_pad * 4     # resident weight + bias
                      + TS * O_pad * 4 + TS * H * 4)  # f32 temporaries
        vmem_limit = int(min(_vmem_capacity_bytes(),
                             max(8 << 20, 2 * tile_bytes + (2 << 20))))

        grid_spec = pltpu.PrefetchScalarGridSpec(
            num_scalar_prefetch=1,
            grid=(B, n_row_tiles),
            in_specs=[
                pl.BlockSpec((pl.Squeezed(), 1, H),
                             lambda b, t, cue: (b, 0, 0)),        # subject vec (per batch)
                pl.BlockSpec((pl.Squeezed(), TS, H),
                             lambda b, t, cue: (b, t, 0)),        # hidden_states row tile
                pl.BlockSpec((H, O_pad), lambda b, t, cue: (0, 0)),  # W^T (resident)
                pl.BlockSpec((1, O_pad), lambda b, t, cue: (0, 0)),  # bias (resident)
            ],
            out_specs=pl.BlockSpec((pl.Squeezed(), TS, O_pad),
                                   lambda b, t, cue: (b, t, 0)),
        )

        out_pad = pl.pallas_call(
            _make_kernel(TS, self.use_bf16_mxu),
            out_shape=jax.ShapeDtypeStruct((B, S, O_pad), out_dtype),
            grid_spec=grid_spec,
            compiler_params=pltpu.CompilerParams(
                dimension_semantics=("parallel", "parallel"),
                vmem_limit_bytes=vmem_limit),
        )(cue_len, s_mat, hs, self.w_pad, self.b_pad)

        # Slice off lane padding and restore f32 in the wrapper (XLA side).
        return out_pad[:, :, :O].astype(jnp.float32)


def _reference(hidden_states, batch_subject_ids, input_mask, weight, bias):
    B, S, H = hidden_states.shape
    rows = []
    for b in range(B):
        s = (hidden_states[b, batch_subject_ids[b, 0]]
             + hidden_states[b, batch_subject_ids[b, 1]])
        cue_len = jnp.sum(input_mask[b])
        m = (jnp.arange(S) < cue_len).astype(jnp.float32)[:, None]
        rows.append(hidden_states[b] + m * s[None, :])
    hs = jnp.stack(rows)
    logits = hs @ weight.T + bias
    return jax.nn.sigmoid(logits) ** 4


if __name__ == "__main__":
    B, S, H = 2, 8, 32
    num_p = 4
    O = num_p * 2

    key = jax.random.PRNGKey(0)
    k1, k2, k3 = jax.random.split(key, 3)

    hidden_states = jax.random.normal(k1, (B, S, H), dtype=jnp.float32)
    batch_subject_ids = jnp.array([[1, 3], [2, 6]], dtype=jnp.int32)   # (B, 2)
    # cue lengths 5 and 7 (contiguous prefix masks, matching the module's usage)
    input_mask = jnp.stack([
        (jnp.arange(S) < 5).astype(jnp.int32),
        (jnp.arange(S) < 7).astype(jnp.int32),
    ])
    weight = 0.1 * jax.random.normal(k2, (O, H), dtype=jnp.float32)    # PyTorch (out, in)
    bias = 0.05 * jax.random.normal(k3, (O,), dtype=jnp.float32)

    model = Model4po(weight, bias)
    out = model(hidden_states, batch_subject_ids, input_mask)
    out = jax.block_until_ready(out)

    ref = _reference(hidden_states, batch_subject_ids, input_mask, weight, bias)
    assert out.shape == (B, S, O)
    # f32 MXU accumulate; bf16 output store -> ~0.4% rounding on [0,1] values.
    assert jnp.allclose(out, ref, atol=1e-2, rtol=1e-2), float(jnp.max(jnp.abs(out - ref)))

    print("KERNEL_OK")
</pallas_src>

<mosaic_0001>
module attributes {stable_mosaic.version = 11 : i64} {
  func.func @kernel(%arg0: i32, %arg1: i32, %arg2: memref<2xi32, #tpu.memory_space<smem>>, %arg3: memref<1x1x32xf32, #tpu.memory_space<vmem>>, %arg4: memref<1x8x32xf32, #tpu.memory_space<vmem>>, %arg5: memref<32x128xf32, #tpu.memory_space<vmem>>, %arg6: memref<1x128xf32, #tpu.memory_space<vmem>>, %arg7: memref<1x8x128xbf16, #tpu.memory_space<vmem>>) attributes {dimension_semantics = [#tpu.dimension_semantics<parallel>, #tpu.dimension_semantics<parallel>], iteration_bounds = array<i64: 2, 1>, scalar_prefetch = 1 : i64, scratch_operands = 0 : i64, tpu.core_type = #tpu.core_type<tc>, window_params = [{transform_indices = @transform_0, window_bounds = array<i64: 1, 1, 32>}, {transform_indices = @transform_1, window_bounds = array<i64: 1, 8, 32>}, {pipeline_mode = #tpu.pipeline_mode<synchronous>, transform_indices = @transform_2, window_bounds = array<i64: 32, 128>}, {pipeline_mode = #tpu.pipeline_mode<synchronous>, transform_indices = @transform_3, window_bounds = array<i64: 1, 128>}, {transform_indices = @transform_4, window_bounds = array<i64: 1, 8, 128>}]} {
    %0 = arith.index_cast %arg0 : i32 to index
    %1 = memref.load %arg2[%0] : memref<2xi32, #tpu.memory_space<smem>>
    %c0 = arith.constant 0 : index
    %c0_0 = arith.constant 0 : index
    %c0_1 = arith.constant 0 : index
    %2 = vector.load %arg4[%c0, %c0_0, %c0_1] : memref<1x8x32xf32, #tpu.memory_space<vmem>>, vector<1x8x32xf32>
    %3 = vector.shape_cast %2 : vector<1x8x32xf32> to vector<8x32xf32>
    %c0_2 = arith.constant 0 : index
    %c0_3 = arith.constant 0 : index
    %c0_4 = arith.constant 0 : index
    %4 = vector.load %arg3[%c0_2, %c0_3, %c0_4] : memref<1x1x32xf32, #tpu.memory_space<vmem>>, vector<1x1x32xf32>
    %5 = vector.shape_cast %4 : vector<1x1x32xf32> to vector<1x32xf32>
    %c8_i32 = arith.constant 8 : i32
    %6 = arith.muli %arg1, %c8_i32 : i32
    %7 = tpu.iota {dimensions = array<i32: 0>} : vector<8x1xi32>
    %8 = vector.broadcast %6 : i32 to vector<8x1xi32>
    %9 = arith.addi %8, %7 : vector<8x1xi32>
    %10 = vector.broadcast %1 : i32 to vector<8x1xi32>
    %11 = arith.cmpi slt, %9, %10 : vector<8x1xi32>
    %cst = arith.constant 0.000000e+00 : f32
    %12 = vector.shape_cast %11 : vector<8x1xi1> to vector<8x1xi1>
    %13 = vector.broadcast %12 : vector<8x1xi1> to vector<8x32xi1>
    %14 = vector.shape_cast %5 : vector<1x32xf32> to vector<1x32xf32>
    %15 = vector.broadcast %14 : vector<1x32xf32> to vector<8x32xf32>
    %16 = vector.broadcast %cst : f32 to vector<8x32xf32>
    %17 = arith.select %13, %15, %16 : vector<8x32xi1>, vector<8x32xf32>
    %18 = arith.addf %3, %17 : vector<8x32xf32>
    %c0_5 = arith.constant 0 : index
    %c0_6 = arith.constant 0 : index
    %19 = vector.load %arg5[%c0_5, %c0_6] : memref<32x128xf32, #tpu.memory_space<vmem>>, vector<32x128xf32>
    %cst_7 = arith.constant dense<0.000000e+00> : vector<8x128xf32>
    %20 = tpu.matmul %18, %19, %cst_7 {dimension_numbers = #tpu.dot_dimension_numbers<[1], [0], [0], [1], [0, 0, 1, 1], [], []>} : vector<8x32xf32>, vector<32x128xf32>, vector<8x128xf32> -> vector<8x128xf32>
    %c0_8 = arith.constant 0 : index
    %c0_9 = arith.constant 0 : index
    %21 = vector.load %arg6[%c0_8, %c0_9] : memref<1x128xf32, #tpu.memory_space<vmem>>, vector<1x128xf32>
    %22 = vector.broadcast %21 : vector<1x128xf32> to vector<8x128xf32>
    %23 = arith.addf %20, %22 : vector<8x128xf32>
    %24 = arith.negf %23 : vector<8x128xf32>
    %25 = math.exp %24 : vector<8x128xf32>
    %cst_10 = arith.constant 1.000000e+00 : f32
    %26 = vector.broadcast %cst_10 : f32 to vector<8x128xf32>
    %27 = arith.addf %26, %25 : vector<8x128xf32>
    %28 = arith.divf %26, %27 : vector<8x128xf32>
    %29 = arith.mulf %28, %28 : vector<8x128xf32>
    %30 = arith.mulf %29, %29 : vector<8x128xf32>
    %31 = arith.truncf %30 : vector<8x128xf32> to vector<8x128xbf16>
    %c0_11 = arith.constant 0 : index
    %c0_12 = arith.constant 0 : index
    %c0_13 = arith.constant 0 : index
    %32 = vector.load %arg7[%c0_11, %c0_12, %c0_13] : memref<1x8x128xbf16, #tpu.memory_space<vmem>>, vector<1x8x128xbf16>
    %33 = vector.shape_cast %32 : vector<1x8x128xbf16> to vector<8x128xbf16>
    %34 = vector.shape_cast %31 : vector<8x128xbf16> to vector<1x8x128xbf16>
    tpu.vector_store %arg7[%c0_11, %c0_12, %c0_13], %34 {strides = array<i32>} : memref<1x8x128xbf16, #tpu.memory_space<vmem>>, vector<1x8x128xbf16>,
    return
  }
  func.func @transform_0(%arg0: i32, %arg1: i32, %arg2: memref<2xi32, #tpu.memory_space<smem>>) -> (i32, i32, i32) {
    %c0_i32 = arith.constant 0 : i32
    %c0_i32_0 = arith.constant 0 : i32
    %c0_i32_1 = arith.constant 0 : i32
    return %arg0, %c0_i32, %c0_i32_0 : i32, i32, i32
  }
  func.func @transform_1(%arg0: i32, %arg1: i32, %arg2: memref<2xi32, #tpu.memory_space<smem>>) -> (i32, i32, i32) {
    %c0_i32 = arith.constant 0 : i32
    %c0_i32_0 = arith.constant 0 : i32
    return %arg0, %arg1, %c0_i32 : i32, i32, i32
  }
  func.func @transform_2(%arg0: i32, %arg1: i32, %arg2: memref<2xi32, #tpu.memory_space<smem>>) -> (i32, i32) {
    %c0_i32 = arith.constant 0 : i32
    %c0_i32_0 = arith.constant 0 : i32
    %c0_i32_1 = arith.constant 0 : i32
    return %c0_i32, %c0_i32_0 : i32, i32
  }
  func.func @transform_3(%arg0: i32, %arg1: i32, %arg2: memref<2xi32, #tpu.memory_space<smem>>) -> (i32, i32) {
    %c0_i32 = arith.constant 0 : i32
    %c0_i32_0 = arith.constant 0 : i32
    %c0_i32_1 = arith.constant 0 : i32
    return %c0_i32, %c0_i32_0 : i32, i32
  }
  func.func @transform_4(%arg0: i32, %arg1: i32, %arg2: memref<2xi32, #tpu.memory_space<smem>>) -> (i32, i32, i32) {
    %c0_i32 = arith.constant 0 : i32
    %c0_i32_0 = arith.constant 0 : i32
    return %arg0, %arg1, %c0_i32 : i32, i32, i32
  }
}

</mosaic_0001>

<llo_original>
// kernel: tpu_custom_call.1
$region0: #{tpu_custom_call.1}
  #allocation0 [shape = 'u32[]', space=smem, size = 0x4, offset = 0x4, fixed_abs, tag = 'smem constant byte address 0x4 - core index']
  #allocation1 [shape = 'u32[144,128]{1,0:T(1,128)}', space=vmem, size = 0x12000, scoped, tag = 'internal scratch']
  #allocation2 [shape = 's32[1]{0}', space=sflag, size = 0x4, scoped, tag = 'scoped memory for tpu_custom_call.1']
  #allocation3 [shape = 'u8[512]{0}', space=smem, size = 0x200, scoped, tag = 'prefetched SMEM operand 0']
  %s0 = inlined_call_operand.hbm [shape: s32[2], index: 0, kind: input, shape index: {}]
  %s1 = inlined_call_operand.vmem [shape: f32[2,1,32], index: 1, kind: input, shape index: {}]
  %s2 = inlined_call_operand.hbm [shape: f32[2,8,32], index: 2, kind: input, shape index: {}]
  %s3 = inlined_call_operand.hbm [shape: f32[32,128], index: 3, kind: input, shape index: {}]
  %s4 = inlined_call_operand.vmem [shape: f32[1,128], index: 4, kind: input, shape index: {}]
  %s5 = inlined_call_operand.hbm [shape: bf16[2,8,128], index: 5, kind: output, shape index: {}]
  %s6 = sld [smem:[#allocation0]]
  $region57: #{tpu_custom_call.1} parent=0
    _
  %s8 = ssub.s32 1, %s6
  %s9 = scalar_select 0, %s8, %s6
  %11 = dma.hbm_to_smem %s0, 16, [#allocation3], [#allocation2]
  %12 = dma.done [#allocation2], 16
  %13 = sfence
  $region1: #{tpu_custom_call.1} parent=0
    #allocation4 [shape = 'u8[8192]{0}', space=vmem, size = 0x2000, scoped, tag = 'input window, operand 2']
    #allocation5 [shape = 's32[2]{0}', space=sflag, size = 0x8, scoped, tag = 'scoped memory for tpu_custom_call.1']
    #allocation6 [shape = 's32[2]{0}', space=sflag, size = 0x8, scoped, tag = 'scoped memory for tpu_custom_call.1']
    #allocation7 [shape = 'u8[16384]{0}', space=vmem, size = 0x4000, scoped, tag = 'input window, operand 3, single buffered']
    #allocation8 [shape = 's32[1]{0}', space=sflag, size = 0x4, scoped, tag = 'scoped memory for tpu_custom_call.1']
    #allocation9 [shape = 'u8[4096]{0}', space=vmem, size = 0x1000, scoped, tag = 'output window, operand 0']
    %14 = vsyncpa [#allocation5], 0
    %s15 = scalar_lea.sflag [#allocation5], 1
    %16 = vsyncpa %s15, 0
    %17 = vsyncpa [#allocation8], 0
    %18 = vsyncpa [#allocation6], 0
    %s19 = scalar_lea.sflag [#allocation6], 1
    %20 = vsyncpa %s19, 0
    loop: start=0, step=1, limit=4
    $region2: #{tpu_custom_call.1} parent=1 // loop_pre_header
      _
    $region3: #{tpu_custom_call.1} parent=1 // loop_header
      %s22 = sphi 0, %s26
      %p23 = scmp.ge.s32.totalorder %s22, 4
      %s29 = sphi 0, %s41
      %s30 = sphi 0, %s37
      %s31 = sphi 0, %s29
      %s32 = sphi 0, %s30
      %s33 = sphi 0, %s31
      %s34 = sphi 0, %s32
      %s44 = sphi 0, %s46
      %s47 = sphi 0, %s44
      %s48 = sphi 0, %s47
      %s64 = sphi 0, %s48
      %s72 = sphi 0, %s74
      %s75 = sphi 0, %s72
      %s76 = sphi 0, %s75
      %s92 = sphi 0, %s76
      %s96 = sphi 0, %s96
      %s98 = sphi 0, %s96
      %s99 = sphi 0, %s98
      %s113 = sphi 0, %s99
      %s117 = sphi 0, %s117
      %s119 = sphi 0, %s117
      %s120 = sphi 0, %s119
      %s134 = sphi 0, %s120
      %s142 = sphi 0, %s144
      %s145 = sphi 0, %s142
      %s146 = sphi 0, %s145
      %s162 = sphi 0, %s146
    $region4: #{tpu_custom_call.1} parent=1 // loop_header_branch
      %25 = sbr.rel (%p23) target = $region8
    $region5: #{tpu_custom_call.1} parent=1 // loop_body
      %s27 = ssub.s32 %s22, 1
      %s28 = ssub.s32 %s22, 2
      %s35 = sadd.s32 1, %s30
      %p36 = scmp.ge.s32.totalorder %s35, 1
      %s37 = scalar_select %p36, 0, %s35
      %s38 = sadd.s32 1, %s29
      %s39 = scalar_select %p36, %s38, %s29
      %p40 = scmp.ge.s32.totalorder %s39, 2
      %s41 = scalar_select %p40, 0, %s39
      %s42 = ssub.s32 %s29, %s41
      %p43 = scmp.eq.s32.totalorder %s42, 0
      %s45 = sadd.s32 %s44, 1
      %s46 = scalar_select %p43, %s44, %s45
      %p49 = pneg %p43
      %p50 = scmp.eq.s32.totalorder %s22, 1
      %p51 = por %p49, %p50
      %p52 = scmp.ne.s32.totalorder %s44, %s47
      %p53 = scmp.eq.s32.totalorder %s22, 0
      %p54 = por %p52, %p53
      %p55 = scmp.ne.s32.totalorder %s44, %s47
      %p56 = scmp.eq.s32.totalorder %s27, 1
      %p57 = por %p55, %p56
      %p58 = scmp.ne.s32.totalorder %s47, %s48
      %p59 = scmp.eq.s32.totalorder %s27, 0
      %p60 = por %p58, %p59
      %p61 = scmp.ne.s32.totalorder %s47, %s48
      %p62 = scmp.eq.s32.totalorder %s28, 1
      %p63 = por %p61, %p62
      %p65 = scmp.ne.s32.totalorder %s48, %s64
      %p66 = scmp.eq.s32.totalorder %s28, 0
      %p67 = por %p65, %p66
      %s68 = ssub.s32 %s29, %s41
      %s69 = ssub.s32 %s30, %s37
      %s70 = sor.u32 %s68, %s69
      %p71 = scmp.eq.s32.totalorder %s70, 0
      %s73 = sadd.s32 %s72, 1
      %s74 = scalar_select %p71, %s72, %s73
      %p77 = pneg %p71
      %p78 = scmp.eq.s32.totalorder %s22, 1
      %p79 = por %p77, %p78
      %p80 = scmp.ne.s32.totalorder %s72, %s75
      %p81 = scmp.eq.s32.totalorder %s22, 0
      %p82 = por %p80, %p81
      %p83 = scmp.ne.s32.totalorder %s72, %s75
      %p84 = scmp.eq.s32.totalorder %s27, 1
      %p85 = por %p83, %p84
      %p86 = scmp.ne.s32.totalorder %s75, %s76
      %p87 = scmp.eq.s32.totalorder %s27, 0
      %p88 = por %p86, %p87
      %p89 = scmp.ne.s32.totalorder %s75, %s76
      %p90 = scmp.eq.s32.totalorder %s28, 1
      %p91 = por %p89, %p90
      %p93 = scmp.ne.s32.totalorder %s76, %s92
      %p94 = scmp.eq.s32.totalorder %s28, 0
      %p95 = por %p93, %p94
      %s97 = sadd.s32 %s96, 1
      %p100 = scmp.eq.s32.totalorder %s22, 1
      %p101 = scmp.ne.s32.totalorder %s96, %s98
      %p102 = scmp.eq.s32.totalorder %s22, 0
      %p103 = por %p101, %p102
      %p104 = scmp.ne.s32.totalorder %s96, %s98
      %p105 = scmp.eq.s32.totalorder %s27, 1
      %p106 = por %p104, %p105
      %p107 = scmp.ne.s32.totalorder %s98, %s99
      %p108 = scmp.eq.s32.totalorder %s27, 0
      %p109 = por %p107, %p108
      %p110 = scmp.ne.s32.totalorder %s98, %s99
      %p111 = scmp.eq.s32.totalorder %s28, 1
      %p112 = por %p110, %p111
      %p114 = scmp.ne.s32.totalorder %s99, %s113
      %p115 = scmp.eq.s32.totalorder %s28, 0
      %p116 = por %p114, %p115
      %s118 = sadd.s32 %s117, 1
      %p121 = scmp.eq.s32.totalorder %s22, 1
      %p122 = scmp.ne.s32.totalorder %s117, %s119
      %p123 = scmp.eq.s32.totalorder %s22, 0
      %p124 = por %p122, %p123
      %p125 = scmp.ne.s32.totalorder %s117, %s119
      %p126 = scmp.eq.s32.totalorder %s27, 1
      %p127 = por %p125, %p126
      %p128 = scmp.ne.s32.totalorder %s119, %s120
      %p129 = scmp.eq.s32.totalorder %s27, 0
      %p130 = por %p128, %p129
      %p131 = scmp.ne.s32.totalorder %s119, %s120
      %p132 = scmp.eq.s32.totalorder %s28, 1
      %p133 = por %p131, %p132
      %p135 = scmp.ne.s32.totalorder %s120, %s134
      %p136 = scmp.eq.s32.totalorder %s28, 0
      %p137 = por %p135, %p136
      %s138 = ssub.s32 %s29, %s41
      %s139 = ssub.s32 %s30, %s37
      %s140 = sor.u32 %s138, %s139
      %p141 = scmp.eq.s32.totalorder %s140, 0
      %s143 = sadd.s32 %s142, 1
      %s144 = scalar_select %p141, %s142, %s143
      %p147 = pneg %p141
      %p148 = scmp.eq.s32.totalorder %s22, 1
      %p149 = por %p147, %p148
      %p150 = scmp.ne.s32.totalorder %s142, %s145
      %p151 = scmp.eq.s32.totalorder %s22, 0
      %p152 = por %p150, %p151
      %p153 = scmp.ne.s32.totalorder %s142, %s145
      %p154 = scmp.eq.s32.totalorder %s27, 1
      %p155 = por %p153, %p154
      %p156 = scmp.ne.s32.totalorder %s145, %s146
      %p157 = scmp.eq.s32.totalorder %s27, 0
      %p158 = por %p156, %p157
      %p159 = scmp.ne.s32.totalorder %s145, %s146
      %p160 = scmp.eq.s32.totalorder %s28, 1
      %p161 = por %p159, %p160
      %p163 = scmp.ne.s32.totalorder %s146, %s162
      %p164 = scmp.eq.s32.totalorder %s28, 0
      %p165 = por %p163, %p164
      %p166 = scmp.le.s32.totalorder 1, %s22
      %p167 = scmp.lt.s32.totalorder %s22, 3
      %p168 = pnand %p166, %p167
      %p169 = pneg %p168
      // Predicated region
      $region9: #{tpu_custom_call.1} parent=5 // pred_check
        _
      $region10: #{tpu_custom_call.1} parent=5 // pred_check_branch
        %171 = sbr.rel (%p168) target = $region12
      $region11: #{tpu_custom_call.1} parent=5 // pred_region
        %s172 = ssub.s32 %s22, 1
        // Predicated region
        $region13: #{tpu_custom_call.1} parent=11 // pred_check
          %p173 = pneg %p109
        $region14: #{tpu_custom_call.1} parent=11 // pred_check_branch
          %175 = sbr.rel (%p173) target = $region16
        $region15: #{tpu_custom_call.1} parent=11 // pred_region
          %s177 = ssub.s32 512, 512
          %178 = vsyncadd [#allocation8], %s177
          %s179 = sshll.u32 [#allocation7], 4
          %s180 = int_to_ptr.vmem [resolvable:$true] %s179
          %185 = dma.hbm_to_vmem [thread:$0]  %s3, 512, %s180, [#allocation8], 128, 128, 8
        $region16: #{tpu_custom_call.1} parent=11 // pred_fallthru
          _
        // Predicated region
        $region17: #{tpu_custom_call.1} parent=11 // pred_check
          %p186 = pneg %p130
        $region18: #{tpu_custom_call.1} parent=11 // pred_check_branch
          %188 = sbr.rel (%p186) target = $region20
        $region19: #{tpu_custom_call.1} parent=11 // pred_region
          _
        $region20: #{tpu_custom_call.1} parent=11 // pred_fallthru
          _
      $region12: #{tpu_custom_call.1} parent=5 // pred_fallthru
        _
      %p189 = scmp.lt.s32.totalorder %s22, 2
      // Predicated region
      $region21: #{tpu_custom_call.1} parent=5 // pred_check
        %p190 = pneg %p189
      $region22: #{tpu_custom_call.1} parent=5 // pred_check_branch
        %192 = sbr.rel (%p190) target = $region24
      $region23: #{tpu_custom_call.1} parent=5 // pred_region
        // Predicated region
        $region25: #{tpu_custom_call.1} parent=23 // pred_check
          %p193 = pneg %p54
        $region26: #{tpu_custom_call.1} parent=23 // pred_check_branch
          %195 = sbr.rel (%p193) target = $region28
        $region27: #{tpu_custom_call.1} parent=23 // pred_region
          %p196 = scmp.lt.s32.totalorder %s29, 1
          %s197 = scalar_select %p196, %s29, 1
          %s198 = scalar_lea.vmem %s1, %s197
        $region28: #{tpu_custom_call.1} parent=23 // pred_fallthru
          _
        // Predicated region
        $region29: #{tpu_custom_call.1} parent=23 // pred_check
          %p199 = pneg %p82
        $region30: #{tpu_custom_call.1} parent=23 // pred_check_branch
          %201 = sbr.rel (%p199) target = $region32
        $region31: #{tpu_custom_call.1} parent=23 // pred_region
          %s202 = sand.u32 %s72, 1
          %s203 = scalar_lea.sflag [#allocation5], %s202
          %s204 = sand.u32 %s72, 1
          %s205 = smul.addr %s204, 8
          %s206 = scalar_lea.vmem [#allocation4], %s205
          %s208 = ssub.s32 128, 128
          %209 = vsyncadd %s203, %s208
          %s210 = sadd.s32 %s30, %s29
          %s211 = smul.addr %s210, 128
          %s212 = scalar_lea.hbm %s2, %s211
          %s214 = sshll.u32 %s206, 4
          %s215 = int_to_ptr.vmem [resolvable:$true] %s214
          %217 = dma.hbm_to_vmem [thread:$0]  %s212, 128, %s215, %s203
        $region32: #{tpu_custom_call.1} parent=23 // pred_fallthru
          _
      $region24: #{tpu_custom_call.1} parent=5 // pred_fallthru
        _
      %p218 = scmp.le.s32.totalorder 1, %s22
      %p219 = scmp.lt.s32.totalorder %s22, 3
      %p220 = pnand %p218, %p219
      %p221 = pneg %p220
      // Predicated region
      $region33: #{tpu_custom_call.1} parent=5 // pred_check
        _
      $region34: #{tpu_custom_call.1} parent=5 // pred_check_branch
        %223 = sbr.rel (%p220) target = $region36
      $region35: #{tpu_custom_call.1} parent=5 // pred_region
        %s224 = ssub.s32 %s22, 1
        %s225 = sand.u32 %s75, 1
        %s226 = scalar_lea.sflag [#allocation5], %s225
        %s227 = sand.u32 %s75, 1
        %s228 = smul.addr %s227, 8
        %s229 = scalar_lea.vmem [#allocation4], %s228
        // Predicated region
        $region37: #{tpu_custom_call.1} parent=35 // pred_check
          %p230 = pneg %p88
        $region38: #{tpu_custom_call.1} parent=35 // pred_check_branch
          %232 = sbr.rel (%p230) target = $region40
        $region39: #{tpu_custom_call.1} parent=35 // pred_region
          %233 = dma.done %s226, 128
        $region40: #{tpu_custom_call.1} parent=35 // pred_fallthru
          _
        // Predicated region
        $region41: #{tpu_custom_call.1} parent=35 // pred_check
          %p234 = pneg %p109
        $region42: #{tpu_custom_call.1} parent=35 // pred_check_branch
          %236 = sbr.rel (%p234) target = $region44
        $region43: #{tpu_custom_call.1} parent=35 // pred_region
          %237 = dma.done [#allocation8], 512
        $region44: #{tpu_custom_call.1} parent=35 // pred_fallthru
          _
        %p238 = scmp.lt.s32.totalorder %s31, 1
        %s239 = scalar_select %p238, %s31, 1
        %s240 = scalar_lea.vmem %s1, %s239
        %p241 = pneg %p60
        %p242 = pneg %p57
        %s243 = sand.u32 %s75, 1
        %s244 = scalar_lea.sflag [#allocation5], %s243
        %s245 = sand.u32 %s75, 1
        %s246 = smul.addr %s245, 8
        %s247 = scalar_lea.vmem [#allocation4], %s246
        %p248 = pneg %p88
        %p249 = pneg %p85
        %p250 = pneg %p109
        %p251 = pneg %p106
        %p252 = pneg %p130
        %p253 = pneg %p127
        %p254 = pneg %p158
        %p255 = pneg %p155
        %s256 = sand.u32 %s145, 1
        %s257 = scalar_lea.sflag [#allocation6], %s256
        %s258 = sand.u32 %s145, 1
        %s259 = smul.addr %s258, 4
        %s260 = scalar_lea.vmem [#allocation9], %s259
        %p261 = scmp.lt.s32.totalorder %s31, 1
        %s262 = scalar_select %p261, %s31, 1
        %s263 = scalar_lea.vmem %s1, %s262
        %s264 = sld [smem:[#allocation3 + %s31]]
        %v265 = vld [vmem:[%s229] sm:$0xff]
        %v266 = vld [vmem:[%s263] sm:$0x1]
        %s267 = smul.u32 %s32, 8
        %v268 = vlaneseq
        %v269 = vshrl.u32 %v268, 7
        %v270 = vstv %s267
        %v271 = vadd.s32 %v270, %v269
        %v272 = vstv %s264
        %vm273 = vcmp.lt.s32.totalorder %v271, %v272
        %v274 = vsel %vm273, 1, 0
        %vm275 = vcmp.eq.s32.totalorder %v274, 1
        %v277 = vlaneseq
        %v278 = vshrl.u32 %v277, 7
        %v279 = vsub.s32 0, %v278
        %v280 = vrot.slane %v266, %v279
        %v282 = vsel %vm275, %v280, 0.0
        %v283 = vadd.f32 %v265, %v282
        %v284 = vld [vmem:[#allocation7] sm:$0xff]
        %v285 = vld [vmem:[#allocation7 + $0x8] sm:$0xff]
        %v286 = vld [vmem:[#allocation7 + $0x10] sm:$0xff]
        %v287 = vld [vmem:[#allocation7 + $0x18] sm:$0xff]
        %v288 = vld [vmem:[%s4] sm:$0x1]
        %v290 = vlaneseq
        %v291 = vshrl.u32 %v290, 7
        %v292 = vsub.s32 0, %v291
        %v293 = vrot.slane %v288, %v292
        %vm295 = vcmask 261120
        %v297 = vsel %vm295, %v283, 0
        %299 = vmatprep.subr.mxu0 0.0
        %300 = vmatpush1.msra.mxu0 %v284
        %301 = vmatprep.subr.mxu0 0.0
        %302 = vmatpush1.msra.mxu0 %v285
        %303 = vmatprep.subr.mxu0 0.0
        %304 = vmatpush1.msra.mxu0 %v286
        %305 = vmatprep.subr.mxu0 0.0
        %306 = vmatpush1.msra.mxu0 %v287
        %307 = vmatprep.subr.mxu0 0.0
        %308 = vmatpush1.msra.mxu0 0.0
        %309 = vmatprep.subr.mxu0 0.0
        %310 = vmatpush1.msra.mxu0 0.0
        %311 = vmatprep.subr.mxu0 0.0
        %312 = vmatpush1.msra.mxu0 0.0
        %313 = vmatprep.subr.mxu0 0.0
        %314 = vmatpush1.msra.mxu0 0.0
        %315 = vmatprep.subr.mxu0 0.0
        %316 = vmatpush1.msra.mxu0 0.0
        %317 = vmatprep.subr.mxu0 0.0
        %318 = vmatpush1.msra.mxu0 0.0
        %319 = vmatprep.subr.mxu0 0.0
        %320 = vmatpush1.msra.mxu0 0.0
        %321 = vmatprep.subr.mxu0 0.0
        %322 = vmatpush1.msra.mxu0 0.0
        %323 = vmatprep.subr.mxu0 0.0
        %324 = vmatpush1.msra.mxu0 0.0
        %325 = vmatprep.subr.mxu0 0.0
        %326 = vmatpush1.msra.mxu0 0.0
        %327 = vmatprep.subr.mxu0 0.0
        %328 = vmatpush1.msra.mxu0 0.0
        %329 = vmatprep.subr.mxu0 0.0
        %330 = vmatpush1.msra.mxu0 0.0
        %331 = vmatprep.subr.mxu0 0.0
        %332 = vmatpush1.msra.mxu0 0.0
        %333 = vmatprep.subr.mxu0 0.0
        %334 = vmatpush1.msra.mxu0 0.0
        %335 = vmatprep.subr.mxu0 0.0
        %336 = vmatpush1.msra.mxu0 0.0
        %337 = vmatprep.subr.mxu0 0.0
        %338 = vmatpush1.msra.mxu0 0.0
        %339 = vmatprep.subr.mxu0 0.0
        %340 = vmatpush1.msra.mxu0 0.0
        %341 = vmatprep.subr.mxu0 0.0
        %342 = vmatpush1.msra.mxu0 0.0
        %343 = vmatprep.subr.mxu0 0.0
        %344 = vmatpush1.msra.mxu0 0.0
        %345 = vmatprep.subr.mxu0 0.0
        %346 = vmatpush1.msra.mxu0 0.0
        %347 = vmatprep.subr.mxu0 0.0
        %348 = vmatpush1.msra.mxu0 0.0
        %349 = vmatprep.subr.mxu0 0.0
        %350 = vmatpush1.msra.mxu0 0.0
        %351 = vmatprep.subr.mxu0 0.0
        %352 = vmatpush1.msra.mxu0 0.0
        %353 = vmatprep.subr.mxu0 0.0
        %354 = vmatpush1.msra.mxu0 0.0
        %355 = vmatprep.subr.mxu0 0.0
        %356 = vmatpush1.msra.mxu0 0.0
        %357 = vmatprep.subr.mxu0 0.0
        %358 = vmatpush1.msra.mxu0 0.0
        %359 = vmatprep.subr.mxu0 0.0
        %360 = vmatpush1.msra.mxu0 0.0
        %361 = vmatprep.subr.mxu0 0.0
        %362 = vmatpush1.msra.mxu0 0.0
        %363 = vmatprep.mubr.f32.mxu0 0.0
        %364 = vmatmul.mubr.f32.gmra.mrb[0].mxu0 %v297
        %v365 = vpop.f32.mrb[0].mxu0
        %v366 = vadd.f32 %v293, %v365
        %v367 = vpop.f32.mrb[0].mxu0
        %368 = vdwg.mxu0
        %v369 = vxor.u32 %v366, 2147483648
        %v370 = vmul.f32 %v369, 1.442695
        %v371 = vpow.pop %v370
        %v372 = vadd.f32 %v371, 1.0
        %v373 = vrcp.pop %v372
        %v374 = vmul.f32 1.0, %v373
        %v375 = vmul.f32 %v374, %v374
        %v376 = vmul.f32 %v375, %v375
        %v377 = vpack.c.bf16 %v376, %v376
        %378 = vst [vmem:[%s260] sm:$0xf] %v377
        %s379 = sand.u32 %s145, 1
        %s380 = scalar_lea.sflag [#allocation6], %s379
        %s381 = sand.u32 %s145, 1
        %s382 = smul.addr %s381, 4
        %s383 = scalar_lea.vmem [#allocation9], %s382
        // Predicated region
        $region45: #{tpu_custom_call.1} parent=35 // pred_check
          %p384 = pneg %p155
        $region46: #{tpu_custom_call.1} parent=35 // pred_check_branch
          %386 = sbr.rel (%p384) target = $region48
        $region47: #{tpu_custom_call.1} parent=35 // pred_region
          %s388 = ssub.s32 64, 64
          %389 = vsyncadd %s380, %s388
          %s390 = sadd.s32 %s32, %s31
          %s391 = smul.addr %s390, 64
          %s392 = scalar_lea.hbm %s5, %s391
          %s394 = sshll.u32 %s383, 4
          %s395 = int_to_ptr.vmem [resolvable:$true] %s394
          %397 = dma.vmem_to_hbm [thread:$0]  %s395, 64, %s392, %s380
        $region48: #{tpu_custom_call.1} parent=35 // pred_fallthru
          _
      $region36: #{tpu_custom_call.1} parent=5 // pred_fallthru
        _
      %p398 = scmp.le.s32.totalorder 2, %s22
      // Predicated region
      $region49: #{tpu_custom_call.1} parent=5 // pred_check
        %p399 = pneg %p398
      $region50: #{tpu_custom_call.1} parent=5 // pred_check_branch
        %401 = sbr.rel (%p399) target = $region52
      $region51: #{tpu_custom_call.1} parent=5 // pred_region
        %s402 = ssub.s32 %s22, 2
        // Predicated region
        $region53: #{tpu_custom_call.1} parent=51 // pred_check
          %p403 = pneg %p161
        $region54: #{tpu_custom_call.1} parent=51 // pred_check_branch
          %405 = sbr.rel (%p403) target = $region56
        $region55: #{tpu_custom_call.1} parent=51 // pred_region
          %s406 = sand.u32 %s146, 1
          %s407 = scalar_lea.sflag [#allocation6], %s406
          %s408 = sand.u32 %s146, 1
          %s409 = smul.addr %s408, 4
          %s410 = scalar_lea.vmem [#allocation9], %s409
          %411 = dma.done %s407, 64
        $region56: #{tpu_custom_call.1} parent=51 // pred_fallthru
          _
      $region52: #{tpu_custom_call.1} parent=5 // pred_fallthru
        _
    $region6: #{tpu_custom_call.1} parent=1 // loop_footer
      %s26 = sadd.s32 1, %s22
    $region7: #{tpu_custom_call.1} parent=1 // loop_footer_branch
      %21 = sbr.rel target = $region3
    $region8: #{tpu_custom_call.1} parent=1 // loop_exit
      _
    %412 = vsyncpa [#allocation5], 1
    %s413 = scalar_lea.sflag [#allocation5], 1
    %414 = vsyncpa %s413, 1
    %415 = vsyncpa [#allocation8], 1
    %416 = vsyncpa [#allocation6], 1
    %s417 = scalar_lea.sflag [#allocation6], 1
    %418 = vsyncpa %s417, 1

</llo_original>
